<compile_context>
chip_gen: v6e
topology: v6e:2x2x1
jax: 0.10.0
libtpu: 0.0.40
codegen_flags: <defaults>
</compile_context>

<pallas_src>
import functools

import jax
import jax.numpy as jnp
from jax.experimental import pallas as pl
from jax.experimental.pallas import tpu as pltpu

_CH = 128  # lane-chunk width of the inner accumulate loop (one vreg lane span)


def _den_elem(pr, tg, p):
    if p == 2:
        return pr * pr + tg * tg          # stay on the VPU mul slot
    if p == 1:
        return pr + tg
    # TODO(synk): non-{1,2} p lowers to pow (exp/log on the EUP) — same
    # semantics as torch.pow but slower and NaN for negative inputs.
    return pr ** p + tg ** p


def _chunk_body(j, carry, *, pred_ref, targ_ref, p, masked, col_base, dk, tile_n):
    num_c, den_c = carry
    start = pl.multiple_of(j * _CH, _CH)
    pr = pred_ref[:, pl.ds(start, _CH)].astype(jnp.float32)
    tg = targ_ref[:, pl.ds(start, _CH)].astype(jnp.float32)
    if masked:
        col = col_base + j * _CH + jax.lax.broadcasted_iota(jnp.int32, (tile_n, _CH), 1)
        valid = col < dk
        pr = jnp.where(valid, pr, 0.0)
        tg = jnp.where(valid, tg, 0.0)
    num_c = num_c + pr * tg
    den_c = den_c + _den_elem(pr, tg, p)
    return num_c, den_c


def _accumulate(pred_ref, targ_ref, num_acc, den_acc, *, p, masked, tile_n, tile_d,
                dk, col_base):
    nchunk = tile_d // _CH
    rem = tile_d % _CH
    if nchunk > 0:
        zeros = jnp.zeros((tile_n, _CH), jnp.float32)
        body = functools.partial(
            _chunk_body, pred_ref=pred_ref, targ_ref=targ_ref, p=p, masked=masked,
            col_base=col_base, dk=dk, tile_n=tile_n)
        num_c, den_c = jax.lax.fori_loop(
            0, nchunk, body, (zeros, zeros),
            unroll=True if nchunk <= 8 else 8)
        num_acc[...] += num_c
        den_acc[...] += den_c
    if rem > 0:
        # Only reachable when tile_d equals the full feature extent (single,
        # exact block), so no tail mask is ever required here.
        lo = nchunk * _CH
        pr = pred_ref[:, lo:tile_d].astype(jnp.float32)
        tg = targ_ref[:, lo:tile_d].astype(jnp.float32)
        num_acc[:, 0:1] += jnp.sum(pr * tg, axis=1, keepdims=True)
        den_acc[:, 0:1] += jnp.sum(_den_elem(pr, tg, p), axis=1, keepdims=True)


def _dice_kernel(pred_ref, targ_ref, num_out, den_out, num_acc, den_acc, *,
                 p, dk, tile_n, tile_d, k_total, kps, mask_tail, gated):
    s = pl.program_id(0)                       # feature shard ("parallel")
    k = pl.program_id(2)                       # local feature tile (reduction, last)
    gk = s * kps + k                           # global feature-tile index

    @pl.when(k == 0)
    def _():
        num_acc[...] = jnp.zeros_like(num_acc)
        den_acc[...] = jnp.zeros_like(den_acc)

    acc = functools.partial(
        _accumulate, pred_ref, targ_ref, num_acc, den_acc,
        p=p, tile_n=tile_n, tile_d=tile_d, dk=dk,
        col_base=(k_total - 1) * tile_d)

    if gated:
        @pl.when(gk < k_total - 1)
        def _():
            acc(masked=False)                  # hot path: no mask cost

        @pl.when(gk == k_total - 1)
        def _():
            acc(masked=mask_tail)              # mask only on the last tile
        # gk > k_total - 1 (ragged shard): skip; the DMA block index was clamped.
    else:
        acc(masked=False)

    @pl.when(k == pl.num_programs(2) - 1)
    def _():
        # Single cross-lane (XLU) reduce per (shard, row-tile).
        num_out[...] = jnp.sum(num_acc[...], axis=1, keepdims=True)
        den_out[...] = jnp.sum(den_acc[...], axis=1, keepdims=True)


def _vmem_capacity_bytes(default=64 * 1024 * 1024):
    try:
        cap = getattr(pltpu.get_tpu_info(), "vmem_capacity_bytes", None)
        if cap:
            return int(cap)
    except Exception:
        pass
    return default


def _pick_fold(n, d, target=8, max_fold=64):
    """Smallest f >= ceil(target/n) that divides d (sublane fill); 1 if none."""
    if n >= target or d <= 1:
        return 1
    start = -(-target // n)
    for f in range(start, min(max_fold, d) + 1):
        if d % f == 0:
            return f
    return 1


def binary_dice_loss(predict, target, *, smooth=1.0, p=2, reduction="mean",
                     tile_n=None, tile_d=None, n_shards=None):
    assert predict.shape[0] == target.shape[0], \
        "predict & target batch size don't match"
    n = predict.shape[0]
    pred2 = predict.reshape(n, -1)             # keep source dtype; cast in-kernel
    targ2 = target.reshape(n, -1)
    d = pred2.shape[1]

    # --- sublane fill: fold D into the row axis when N < 8 -------------------
    fold = _pick_fold(n, d)
    r, dk = n * fold, d // fold
    pred2 = pred2.reshape(r, dk)               # free row-major reshape
    targ2 = targ2.reshape(r, dk)

    # --- generation-aware VMEM budget -----------------------------------------
    vmem_cap = _vmem_capacity_bytes()
    input_budget = min(int(vmem_cap * 0.30), 40 * 1024 * 1024)   # 2 inputs x 2 bufs
    itemsize = max(jnp.dtype(pred2.dtype).itemsize, jnp.dtype(targ2.dtype).itemsize)
    block_elems = max((input_budget // 4) // itemsize, 8 * _CH)

    # --- tile selection --------------------------------------------------------
    if tile_n is None:
        # Small row tile keeps the chunk-loop working set well inside 64 vregs;
        # step-overhead amortization only depends on tile_n * tile_d.
        tile_n = r if r < 8 else min(32, (r // 8) * 8)
    if tile_d is None:
        budget_d = max(_CH, (block_elems // tile_n) // _CH * _CH)
        tile_d = dk if dk < _CH else min(budget_d, (dk // _CH) * _CH)
    if tile_d >= dk:
        tile_d = dk                            # full-extent block (exact)
    else:
        assert tile_d % _CH == 0, "tile_d must be a multiple of 128 or the full extent"

    k_total = pl.cdiv(dk, tile_d)
    mask_tail = (dk % tile_d) != 0
    row_tiles = pl.cdiv(r, tile_n)

    # --- optional feature-dim sharding (second TC on v7x for small batches) ---
    if n_shards is None:
        n_shards = 2 if (row_tiles == 1 and k_total >= 4) else 1
    n_shards = max(1, min(int(n_shards), k_total))
    kps = pl.cdiv(k_total, n_shards)           # feature tiles per shard
    gated = (n_shards > 1) or mask_tail

    grid = (n_shards, row_tiles, kps)

    def in_map(s, i, k):
        return (i, jnp.minimum(s * kps + k, k_total - 1))  # clamp ragged shards

    kernel = functools.partial(
        _dice_kernel, p=p, dk=dk, tile_n=tile_n, tile_d=tile_d,
        k_total=k_total, kps=kps, mask_tail=mask_tail, gated=gated)

    cost = pl.CostEstimate(
        flops=6 * r * dk,
        transcendentals=0 if p in (1, 2) else r * dk,
        bytes_accessed=pred2.size * pred2.dtype.itemsize
        + targ2.size * targ2.dtype.itemsize + 2 * n_shards * r * 4)

    num_p, den_p = pl.pallas_call(
        kernel,
        out_shape=(jax.ShapeDtypeStruct((n_shards, r, 1), jnp.float32),
                   jax.ShapeDtypeStruct((n_shards, r, 1), jnp.float32)),
        grid_spec=pltpu.PrefetchScalarGridSpec(
            num_scalar_prefetch=0,
            grid=grid,
            in_specs=[
                pl.BlockSpec((tile_n, tile_d), in_map),
                pl.BlockSpec((tile_n, tile_d), in_map),
            ],
            out_specs=(
                pl.BlockSpec((None, tile_n, 1), lambda s, i, k: (s, i, 0)),
                pl.BlockSpec((None, tile_n, 1), lambda s, i, k: (s, i, 0)),
            ),
            scratch_shapes=[
                pltpu.VMEM((tile_n, _CH), jnp.float32),   # num accumulator
                pltpu.VMEM((tile_n, _CH), jnp.float32),   # den accumulator
            ],
        ),
        compiler_params=pltpu.CompilerParams(
            dimension_semantics=("parallel", "parallel", "arbitrary"),
            vmem_limit_bytes=min(int(vmem_cap * 0.6), 64 * 1024 * 1024),
        ),
        cost_estimate=cost,
    )(pred2, targ2)

    # --- cheap finalize in JAX -------------------------------------------------
    num = num_p.reshape(n_shards, n, fold).sum(axis=(0, 2))   # (N,)
    den = den_p.reshape(n_shards, n, fold).sum(axis=(0, 2))
    loss = 1.0 - (num + smooth) / (den + smooth)

    if reduction == "mean":
        return jnp.mean(loss)
    elif reduction == "sum":
        return jnp.sum(loss)
    elif reduction == "none":
        return loss
    else:
        raise Exception("Unexpected reduction {}".format(reduction))


def _reference(predict, target, smooth=1.0, p=2, reduction="mean"):
    n = predict.shape[0]
    pr = predict.reshape(n, -1).astype(jnp.float32)
    tg = target.reshape(n, -1).astype(jnp.float32)
    num = jnp.sum(pr * tg, axis=1) + smooth
    den = jnp.sum(pr ** p + tg ** p, axis=1) + smooth
    loss = 1.0 - num / den
    if reduction == "mean":
        return jnp.mean(loss)
    if reduction == "sum":
        return jnp.sum(loss)
    return loss


if __name__ == "__main__":
    key = jax.random.PRNGKey(0)
    k1, k2, k3, k4, k5, k6 = jax.random.split(key, 6)

    # NCHW inputs, as the PyTorch module would typically receive.
    x = jax.nn.sigmoid(jax.random.normal(k1, (2, 4, 16, 16), dtype=jnp.float32))
    y = (jax.random.uniform(k2, (2, 4, 16, 16)) > 0.5).astype(jnp.float32)

    # 1) Default config (auto tiles; 2x4 sublane fold -> 8 rows, single tile).
    out = jax.block_until_ready(binary_dice_loss(x, y))
    ref = _reference(x, y)
    assert jnp.allclose(out, ref, rtol=1e-5, atol=1e-5), (out, ref)

    # 2) Multi feature-tile accumulation path, per-row output.
    out_none = jax.block_until_ready(
        binary_dice_loss(x, y, reduction="none", tile_d=128))
    ref_none = _reference(x, y, reduction="none")
    assert jnp.allclose(out_none, ref_none, rtol=1e-5, atol=1e-5), (out_none, ref_none)

    # 3) Ragged shape: D=500 -> dk=125 (<128 tail path) + partial row tile.
    x2 = jax.nn.sigmoid(jax.random.normal(k3, (3, 5, 10, 10), dtype=jnp.float32))
    y2 = (jax.random.uniform(k4, (3, 5, 10, 10)) > 0.5).astype(jnp.float32)
    out2 = jax.block_until_ready(binary_dice_loss(x2, y2, reduction="sum"))
    ref2 = _reference(x2, y2, reduction="sum")
    assert jnp.allclose(out2, ref2, rtol=1e-5, atol=1e-5), (out2, ref2)

    # 4) Feature-dim sharding with a ragged shard (k_total=3 over 2 shards).
    x3 = jax.nn.sigmoid(jax.random.normal(k5, (2, 6, 16, 16), dtype=jnp.float32))
    y3 = (jax.random.uniform(k6, (2, 6, 16, 16)) > 0.5).astype(jnp.float32)
    out3 = jax.block_until_ready(
        binary_dice_loss(x3, y3, reduction="none", tile_d=128, n_shards=2))
    ref3 = _reference(x3, y3, reduction="none")
    assert jnp.allclose(out3, ref3, rtol=1e-5, atol=1e-5), (out3, ref3)

    # 5) p=1 special case (no squares, no pow).
    out_p1 = jax.block_until_ready(binary_dice_loss(x, y, p=1))
    ref_p1 = _reference(x, y, p=1)
    assert jnp.allclose(out_p1, ref_p1, rtol=1e-5, atol=1e-5), (out_p1, ref_p1)

    print("KERNEL_OK")
</pallas_src>

<mosaic_0001>
module attributes {stable_mosaic.version = 11 : i64} {
  func.func @_dice_kernel(%arg0: i32, %arg1: i32, %arg2: i32, %arg3: memref<8x256xf32, #tpu.memory_space<vmem>>, %arg4: memref<8x256xf32, #tpu.memory_space<vmem>>, %arg5: memref<1x8x1xf32, #tpu.memory_space<vmem>>, %arg6: memref<1x8x1xf32, #tpu.memory_space<vmem>>, %arg7: memref<8x128xf32, #tpu.memory_space<vmem>>, %arg8: memref<8x128xf32, #tpu.memory_space<vmem>>) attributes {dimension_semantics = [#tpu.dimension_semantics<parallel>, #tpu.dimension_semantics<parallel>, #tpu.dimension_semantics<arbitrary>], iteration_bounds = array<i64: 1, 1, 1>, scalar_prefetch = 0 : i64, scratch_operands = 2 : i64, tpu.core_type = #tpu.core_type<tc>, window_params = [{transform_indices = @transform_0, window_bounds = array<i64: 8, 256>}, {transform_indices = @transform_1, window_bounds = array<i64: 8, 256>}, {transform_indices = @transform_2, window_bounds = array<i64: 1, 8, 1>}, {transform_indices = @transform_3, window_bounds = array<i64: 1, 8, 1>}]} {
    %c0_i32 = arith.constant 0 : i32
    %0 = arith.cmpi eq, %arg2, %c0_i32 : i32
    %1 = arith.extui %0 : i1 to i32
    %c0_i32_0 = arith.constant 0 : i32
    %2 = arith.cmpi ne, %1, %c0_i32_0 : i32
    scf.if %2 {
      %cst_16 = arith.constant 0.000000e+00 : f32
      %37 = vector.broadcast %cst_16 : f32 to vector<8x128xf32>
      %c0_17 = arith.constant 0 : index
      %c0_18 = arith.constant 0 : index
      %38 = vector.load %arg7[%c0_17, %c0_18] : memref<8x128xf32, #tpu.memory_space<vmem>>, vector<8x128xf32>
      tpu.vector_store %arg7[%c0_17, %c0_18], %37 {strides = array<i32>} : memref<8x128xf32, #tpu.memory_space<vmem>>, vector<8x128xf32>,
      %cst_19 = arith.constant 0.000000e+00 : f32
      %39 = vector.broadcast %cst_19 : f32 to vector<8x128xf32>
      %c0_20 = arith.constant 0 : index
      %c0_21 = arith.constant 0 : index
      %40 = vector.load %arg8[%c0_20, %c0_21] : memref<8x128xf32, #tpu.memory_space<vmem>>, vector<8x128xf32>
      tpu.vector_store %arg8[%c0_20, %c0_21], %39 {strides = array<i32>} : memref<8x128xf32, #tpu.memory_space<vmem>>, vector<8x128xf32>,
    } else {
    }
    %cst = arith.constant 0.000000e+00 : f32
    %3 = vector.broadcast %cst : f32 to vector<8x128xf32>
    %c0_i32_1 = arith.constant 0 : i32
    %c128_i32 = arith.constant 128 : i32
    %4 = arith.muli %c0_i32_1, %c128_i32 : i32
    %5 = tpu.assume_multiple %4, 128 : i32
    %c0 = arith.constant 0 : index
    %6 = arith.index_cast %5 : i32 to index
    %7 = vector.load %arg3[%c0, %6] : memref<8x256xf32, #tpu.memory_space<vmem>>, vector<8x128xf32>
    %c0_2 = arith.constant 0 : index
    %8 = arith.index_cast %5 : i32 to index
    %9 = vector.load %arg4[%c0_2, %8] : memref<8x256xf32, #tpu.memory_space<vmem>>, vector<8x128xf32>
    %10 = arith.mulf %7, %9 : vector<8x128xf32>
    %11 = arith.addf %3, %10 : vector<8x128xf32>
    %12 = arith.mulf %7, %7 : vector<8x128xf32>
    %13 = arith.mulf %9, %9 : vector<8x128xf32>
    %14 = arith.addf %12, %13 : vector<8x128xf32>
    %15 = arith.addf %3, %14 : vector<8x128xf32>
    %c1_i32 = arith.constant 1 : i32
    %c128_i32_3 = arith.constant 128 : i32
    %16 = arith.muli %c1_i32, %c128_i32_3 : i32
    %17 = tpu.assume_multiple %16, 128 : i32
    %c0_4 = arith.constant 0 : index
    %18 = arith.index_cast %17 : i32 to index
    %19 = vector.load %arg3[%c0_4, %18] : memref<8x256xf32, #tpu.memory_space<vmem>>, vector<8x128xf32>
    %c0_5 = arith.constant 0 : index
    %20 = arith.index_cast %17 : i32 to index
    %21 = vector.load %arg4[%c0_5, %20] : memref<8x256xf32, #tpu.memory_space<vmem>>, vector<8x128xf32>
    %22 = arith.mulf %19, %21 : vector<8x128xf32>
    %23 = arith.addf %11, %22 : vector<8x128xf32>
    %24 = arith.mulf %19, %19 : vector<8x128xf32>
    %25 = arith.mulf %21, %21 : vector<8x128xf32>
    %26 = arith.addf %24, %25 : vector<8x128xf32>
    %27 = arith.addf %15, %26 : vector<8x128xf32>
    %c2_i32 = arith.constant 2 : i32
    %c0_6 = arith.constant 0 : index
    %c0_7 = arith.constant 0 : index
    %28 = vector.load %arg7[%c0_6, %c0_7] : memref<8x128xf32, #tpu.memory_space<vmem>>, vector<8x128xf32>
    %29 = arith.addf %28, %23 : vector<8x128xf32>
    %c0_8 = arith.constant 0 : index
    %c0_9 = arith.constant 0 : index
    %30 = vector.load %arg7[%c0_8, %c0_9] : memref<8x128xf32, #tpu.memory_space<vmem>>, vector<8x128xf32>
    tpu.vector_store %arg7[%c0_8, %c0_9], %29 {strides = array<i32>} : memref<8x128xf32, #tpu.memory_space<vmem>>, vector<8x128xf32>,
    %c0_10 = arith.constant 0 : index
    %c0_11 = arith.constant 0 : index
    %31 = vector.load %arg8[%c0_10, %c0_11] : memref<8x128xf32, #tpu.memory_space<vmem>>, vector<8x128xf32>
    %32 = arith.addf %31, %27 : vector<8x128xf32>
    %c0_12 = arith.constant 0 : index
    %c0_13 = arith.constant 0 : index
    %33 = vector.load %arg8[%c0_12, %c0_13] : memref<8x128xf32, #tpu.memory_space<vmem>>, vector<8x128xf32>
    tpu.vector_store %arg8[%c0_12, %c0_13], %32 {strides = array<i32>} : memref<8x128xf32, #tpu.memory_space<vmem>>, vector<8x128xf32>,
    %c0_i32_14 = arith.constant 0 : i32
    %34 = arith.cmpi eq, %arg2, %c0_i32_14 : i32
    %35 = arith.extui %34 : i1 to i32
    %c0_i32_15 = arith.constant 0 : i32
    %36 = arith.cmpi ne, %35, %c0_i32_15 : i32
    scf.if %36 {
      %c0_16 = arith.constant 0 : index
      %c0_17 = arith.constant 0 : index
      %37 = vector.load %arg7[%c0_16, %c0_17] : memref<8x128xf32, #tpu.memory_space<vmem>>, vector<8x128xf32>
      %cst_18 = arith.constant dense<0.000000e+00> : vector<8xf32>
      %38 = vector.multi_reduction <add>, %37, %cst_18 [1] : vector<8x128xf32> to vector<8xf32>
      %39 = vector.shape_cast %38 : vector<8xf32> to vector<8x1xf32>
      %c0_19 = arith.constant 0 : index
      %c0_20 = arith.constant 0 : index
      %c0_21 = arith.constant 0 : index
      %40 = vector.load %arg5[%c0_19, %c0_20, %c0_21] : memref<1x8x1xf32, #tpu.memory_space<vmem>>, vector<1x8x1xf32>
      %41 = vector.shape_cast %40 : vector<1x8x1xf32> to vector<8x1xf32>
      %42 = vector.shape_cast %39 : vector<8x1xf32> to vector<1x8x1xf32>
      tpu.vector_store %arg5[%c0_19, %c0_20, %c0_21], %42 {strides = array<i32>} : memref<1x8x1xf32, #tpu.memory_space<vmem>>, vector<1x8x1xf32>,
      %c0_22 = arith.constant 0 : index
      %c0_23 = arith.constant 0 : index
      %43 = vector.load %arg8[%c0_22, %c0_23] : memref<8x128xf32, #tpu.memory_space<vmem>>, vector<8x128xf32>
      %cst_24 = arith.constant dense<0.000000e+00> : vector<8xf32>
      %44 = vector.multi_reduction <add>, %43, %cst_24 [1] : vector<8x128xf32> to vector<8xf32>
      %45 = vector.shape_cast %44 : vector<8xf32> to vector<8x1xf32>
      %c0_25 = arith.constant 0 : index
      %c0_26 = arith.constant 0 : index
      %c0_27 = arith.constant 0 : index
      %46 = vector.load %arg6[%c0_25, %c0_26, %c0_27] : memref<1x8x1xf32, #tpu.memory_space<vmem>>, vector<1x8x1xf32>
      %47 = vector.shape_cast %46 : vector<1x8x1xf32> to vector<8x1xf32>
      %48 = vector.shape_cast %45 : vector<8x1xf32> to vector<1x8x1xf32>
      tpu.vector_store %arg6[%c0_25, %c0_26, %c0_27], %48 {strides = array<i32>} : memref<1x8x1xf32, #tpu.memory_space<vmem>>, vector<1x8x1xf32>,
    } else {
    }
    return
  }
  func.func @transform_0(%arg0: i32, %arg1: i32, %arg2: i32) -> (i32, i32) {
    %c1_i32 = arith.constant 1 : i32
    %0 = arith.muli %arg0, %c1_i32 : i32
    %1 = arith.addi %0, %arg2 : i32
    %c0_i32 = arith.constant 0 : i32
    %2 = arith.minsi %1, %c0_i32 : i32
    %c0_i32_0 = arith.constant 0 : i32
    return %arg1, %2 : i32, i32
  }
  func.func @transform_1(%arg0: i32, %arg1: i32, %arg2: i32) -> (i32, i32) {
    %c1_i32 = arith.constant 1 : i32
    %0 = arith.muli %arg0, %c1_i32 : i32
    %1 = arith.addi %0, %arg2 : i32
    %c0_i32 = arith.constant 0 : i32
    %2 = arith.minsi %1, %c0_i32 : i32
    %c0_i32_0 = arith.constant 0 : i32
    return %arg1, %2 : i32, i32
  }
  func.func @transform_2(%arg0: i32, %arg1: i32, %arg2: i32) -> (i32, i32, i32) {
    %c0_i32 = arith.constant 0 : i32
    %c0_i32_0 = arith.constant 0 : i32
    return %arg0, %arg1, %c0_i32 : i32, i32, i32
  }
  func.func @transform_3(%arg0: i32, %arg1: i32, %arg2: i32) -> (i32, i32, i32) {
    %c0_i32 = arith.constant 0 : i32
    %c0_i32_0 = arith.constant 0 : i32
    return %arg0, %arg1, %c0_i32 : i32, i32, i32
  }
}

</mosaic_0001>

<llo_original>
// kernel: tpu_custom_call.1
$region0: #{tpu_custom_call.1}
  #allocation0 [shape = 'u32[]', space=smem, size = 0x4, offset = 0x4, fixed_abs, tag = 'smem constant byte address 0x4 - core index']
  #allocation1 [shape = 'u32[144,128]{1,0:T(1,128)}', space=vmem, size = 0x12000, scoped, tag = 'internal scratch']
  #allocation2 [shape = 'f32[8,128]{1,0:T(8,128)}', space=vmem, size = 0x1000, scoped, tag = 'scratch operand']
  #allocation3 [shape = 'f32[8,128]{1,0:T(8,128)}', space=vmem, size = 0x1000, scoped, tag = 'scratch operand']
  %s0 = inlined_call_operand.hbm [shape: f32[8,256], index: 0, kind: input, shape index: {}]
  %s1 = inlined_call_operand.hbm [shape: f32[8,256], index: 1, kind: input, shape index: {}]
  %s2 = inlined_call_operand.vmem [shape: f32[1,8,1], index: 2, kind: output, shape index: {0}]
  %s3 = inlined_call_operand.vmem [shape: f32[1,8,1], index: 3, kind: output, shape index: {1}]
  %4 = xla_tuple %s2, %s3
  %s5 = sld [smem:[#allocation0]]
  $region42: #{tpu_custom_call.1} parent=0
    _
  %s7 = ssub.s32 1, %s5
  %s8 = scalar_select 0, %s7, %s5
  $region1: #{tpu_custom_call.1} parent=0
    #allocation4 [shape = 'u8[8192]{0}', space=vmem, size = 0x2000, scoped, tag = 'input window, operand 0, single buffered']
    #allocation5 [shape = 's32[1]{0}', space=sflag, size = 0x4, scoped, tag = 'scoped memory for tpu_custom_call.1']
    #allocation6 [shape = 'u8[8192]{0}', space=vmem, size = 0x2000, scoped, tag = 'input window, operand 1, single buffered']
    #allocation7 [shape = 's32[1]{0}', space=sflag, size = 0x4, scoped, tag = 'scoped memory for tpu_custom_call.1']
    %9 = vsyncpa [#allocation5], 0
    %10 = vsyncpa [#allocation7], 0
    // Predicated region
    $region2: #{tpu_custom_call.1} parent=1 // pred_check
      _
    $region3: #{tpu_custom_call.1} parent=1 // pred_check_branch
      %12 = sbr.rel (0) target = $region5
    $region4: #{tpu_custom_call.1} parent=1 // pred_region
      %s13 = sadd.s32 0, 0
      %p14 = scmp.lt.s32.totalorder %s13, 0
      %s15 = scalar_select %p14, %s13, 0
      %s16 = smul.u32 2, %s15
      %s18 = ssub.s32 256, 256
      %19 = vsyncadd [#allocation5], %s18
      %s20 = smul.addr %s16, 128
      %s21 = scalar_lea.hbm %s0, %s20
      %s23 = sshll.u32 [#allocation4], 4
      %s24 = int_to_ptr.vmem [resolvable:$true] %s23
      %26 = dma.hbm_to_vmem [thread:$0]  %s21, 256, %s24, [#allocation5]
    $region5: #{tpu_custom_call.1} parent=1 // pred_fallthru
      _
    // Predicated region
    $region6: #{tpu_custom_call.1} parent=1 // pred_check
      _
    $region7: #{tpu_custom_call.1} parent=1 // pred_check_branch
      %28 = sbr.rel (0) target = $region9
    $region8: #{tpu_custom_call.1} parent=1 // pred_region
      %s29 = sadd.s32 0, 0
      %p30 = scmp.lt.s32.totalorder %s29, 0
      %s31 = scalar_select %p30, %s29, 0
      %s32 = smul.u32 2, %s31
      %s34 = ssub.s32 256, 256
      %35 = vsyncadd [#allocation7], %s34
      %s36 = smul.addr %s32, 128
      %s37 = scalar_lea.hbm %s1, %s36
      %s39 = sshll.u32 [#allocation6], 4
      %s40 = int_to_ptr.vmem [resolvable:$true] %s39
      %42 = dma.hbm_to_vmem [thread:$0]  %s37, 256, %s40, [#allocation7]
    $region9: #{tpu_custom_call.1} parent=1 // pred_fallthru
      _
    // Predicated region
    $region10: #{tpu_custom_call.1} parent=1 // pred_check
      _
    $region11: #{tpu_custom_call.1} parent=1 // pred_check_branch
      %44 = sbr.rel (0) target = $region13
    $region12: #{tpu_custom_call.1} parent=1 // pred_region
      %45 = dma.done [#allocation5], 256
    $region13: #{tpu_custom_call.1} parent=1 // pred_fallthru
      _
    // Predicated region
    $region14: #{tpu_custom_call.1} parent=1 // pred_check
      _
    $region15: #{tpu_custom_call.1} parent=1 // pred_check_branch
      %47 = sbr.rel (0) target = $region17
    $region16: #{tpu_custom_call.1} parent=1 // pred_region
      %48 = dma.done [#allocation7], 256
    $region17: #{tpu_custom_call.1} parent=1 // pred_fallthru
      _
    %s49 = sadd.s32 0, 0
    %p50 = scmp.lt.s32.totalorder %s49, 0
    %s51 = scalar_select %p50, %s49, 0
    %s52 = smul.u32 2, %s51
    %s53 = sadd.s32 0, 0
    %p54 = scmp.lt.s32.totalorder %s53, 0
    %s55 = scalar_select %p54, %s53, 0
    %s56 = smul.u32 2, %s55
    %p57 = scmp.eq.s32.totalorder 0, 0
    // Predicated region
    $region18: #{tpu_custom_call.1} parent=1 // pred_check
      %p58 = pneg %p57
    $region19: #{tpu_custom_call.1} parent=1 // pred_check_branch
      %60 = sbr.rel (%p58) target = $region21
    $region20: #{tpu_custom_call.1} parent=1 // pred_region
      %61 = vst [vmem:[#allocation2] sm:$0xff] 0.0
      %62 = vst [vmem:[#allocation3] sm:$0xff] 0.0
    $region21: #{tpu_custom_call.1} parent=1 // pred_fallthru
      _
    %v63 = vld [vmem:[#allocation4] sm:$0xff]
    %v64 = vld [vmem:[#allocation6] sm:$0xff]
    %v65 = vmul.f32 %v63, %v64
    %v66 = vadd.f32 %v65, 0.0
    %v67 = vmul.f32 %v63, %v63
    %v68 = vmul.f32 %v64, %v64
    %v69 = vadd.f32 %v67, %v68
    %v70 = vadd.f32 %v69, 0.0
    %s71 = scalar_lea.vmem [#allocation4], 8
    %v72 = vld [vmem:[%s71] sm:$0xff]
    %s73 = scalar_lea.vmem [#allocation6], 8
    %v74 = vld [vmem:[%s73] sm:$0xff]
    %v75 = vmul.f32 %v72, %v74
    %v76 = vadd.f32 %v66, %v75
    %v77 = vmul.f32 %v72, %v72
    %v78 = vmul.f32 %v74, %v74
    %v79 = vadd.f32 %v77, %v78
    %v80 = vadd.f32 %v70, %v79
    %v81 = vld [vmem:[#allocation2] sm:$0xff]
    %v82 = vadd.f32 %v81, %v76
    %83 = vst [vmem:[#allocation2] sm:$0xff] %v82
    %v84 = vld [vmem:[#allocation3] sm:$0xff]
    %v85 = vadd.f32 %v84, %v80
    %86 = vst [vmem:[#allocation3] sm:$0xff] %v85
    // Predicated region
    $region22: #{tpu_custom_call.1} parent=1 // pred_check
      %p87 = pneg %p57
    $region23: #{tpu_custom_call.1} parent=1 // pred_check_branch
      %89 = sbr.rel (%p87) target = $region25
    $region24: #{tpu_custom_call.1} parent=1 // pred_region
      %v90 = vld [vmem:[#allocation2] sm:$0xff]
      %91 = vadd.xlane.f32.xlu0 %v90
      %v92 = vpop.xlane.xlu0 %91
      %vm93 = vcmask 7168
      %94 = vst.msk [vmem:[%s2] sm:$0xff] %vm93, %v92
      %v95 = vld [vmem:[#allocation3] sm:$0xff]
      %96 = vadd.xlane.f32.xlu0 %v95
      %v97 = vpop.xlane.xlu0 %96
      %98 = vst.msk [vmem:[%s3] sm:$0xff] %vm93, %v97
    $region25: #{tpu_custom_call.1} parent=1 // pred_fallthru
      _
    // Predicated region
    $region26: #{tpu_custom_call.1} parent=1 // pred_check
      _
    $region27: #{tpu_custom_call.1} parent=1 // pred_check_branch
      %100 = sbr.rel (0) target = $region29
    $region28: #{tpu_custom_call.1} parent=1 // pred_region
      _
    $region29: #{tpu_custom_call.1} parent=1 // pred_fallthru
      _
    // Predicated region
    $region30: #{tpu_custom_call.1} parent=1 // pred_check
      _
    $region31: #{tpu_custom_call.1} parent=1 // pred_check_branch
      %102 = sbr.rel (0) target = $region33
    $region32: #{tpu_custom_call.1} parent=1 // pred_region
      _
    $region33: #{tpu_custom_call.1} parent=1 // pred_fallthru
      _
    // Predicated region
    $region34: #{tpu_custom_call.1} parent=1 // pred_check
      _
    $region35: #{tpu_custom_call.1} parent=1 // pred_check_branch
      %104 = sbr.rel (0) target = $region37
    $region36: #{tpu_custom_call.1} parent=1 // pred_region
      _
    $region37: #{tpu_custom_call.1} parent=1 // pred_fallthru
      _
    // Predicated region
    $region38: #{tpu_custom_call.1} parent=1 // pred_check
      _
    $region39: #{tpu_custom_call.1} parent=1 // pred_check_branch
      %106 = sbr.rel (0) target = $region41
    $region40: #{tpu_custom_call.1} parent=1 // pred_region
      _
    $region41: #{tpu_custom_call.1} parent=1 // pred_fallthru
      _
    %107 = vsyncpa [#allocation5], 1
    %108 = vsyncpa [#allocation7], 1

</llo_original>
